<compile_context>
chip_gen: v6e
topology: v6e:2x2x1
jax: 0.10.0
libtpu: 0.0.40
codegen_flags: <defaults>
</compile_context>

<pallas_src>
import functools

import jax
import jax.numpy as jnp
from jax.experimental import pallas as pl
from jax.experimental.pallas import tpu as pltpu


def _round_up(x, m):
    return ((x + m - 1) // m) * m


# ----------------------------------------------------------------------------
# Pallas kernels
# ----------------------------------------------------------------------------

def _embed_onehot_kernel(idx_ref, tab_ref, o_ref):
    """One-hot MXU gather for one output tile.

    idx_ref: (TILE, 1) int32 token ids for this tile (VMEM).
    tab_ref: (V_pad, D) embedding table, constant block index -> DMA'd once, resident.
    o_ref:   (TILE, D) output tile (lane-dense, unmasked stores when D % 128 == 0).
    """
    tile = o_ref.shape[0]
    vpad = tab_ref.shape[0]
    idx = idx_ref[...]                                                  # (TILE, 1)
    vocab_iota = jax.lax.broadcasted_iota(jnp.int32, (tile, vpad), 1)   # lane dim = vocab
    one_hot = (idx == vocab_iota).astype(tab_ref.dtype)                 # (TILE, V_pad)
    acc = jnp.dot(one_hot, tab_ref[...],
                  preferred_element_type=jnp.float32,
                  precision=jax.lax.Precision.HIGHEST)
    o_ref[...] = acc.astype(o_ref.dtype)


def _fill_row0_kernel(row_ref, o_ref):
    """drop_text path: broadcast the filler-token embedding (table row 0) to the tile."""
    o_ref[...] = jnp.broadcast_to(row_ref[...], o_ref.shape).astype(o_ref.dtype)


# ----------------------------------------------------------------------------
# Wrappers
# ----------------------------------------------------------------------------

def embedding_gather(table, token_ids, *, tile=512, out_dtype=None):
    """table: (V, D); token_ids: (B, L) int -> (B, L, D) == table[token_ids]."""
    B, L = token_ids.shape
    V, D = table.shape
    out_dtype = table.dtype if out_dtype is None else jnp.dtype(out_dtype)
    tokens = B * L

    # Lane-/sublane-friendly tile; shrink for tiny inputs (multiple of 8).
    tile = max(8, min(tile, _round_up(tokens, 8)))
    n_tiles = pl.cdiv(tokens, tile)          # ragged tail handled by partial blocks

    # Pad the vocab axis once to a lane multiple so the MXU contraction dim is clean.
    # (In a real model this would be done once on the parameter, not per call.)
    vpad = _round_up(V, 128)
    tab = jnp.pad(table, ((0, vpad - V), (0, 0))) if vpad != V else table

    idx = token_ids.reshape(tokens, 1).astype(jnp.int32)

    bytes_accessed = (vpad * D * tab.dtype.itemsize          # table, read once
                      + tokens * 4                           # indices
                      + tokens * D * out_dtype.itemsize)     # output writeback

    out = pl.pallas_call(
        _embed_onehot_kernel,
        grid=(n_tiles,),
        in_specs=[
            pl.BlockSpec((tile, 1), lambda i: (i, 0)),       # per-tile indices (VMEM)
            pl.BlockSpec((vpad, D), lambda i: (0, 0)),       # table: resident
        ],
        out_specs=pl.BlockSpec((tile, D), lambda i: (i, 0)),
        out_shape=jax.ShapeDtypeStruct((tokens, D), out_dtype),
        compiler_params=pltpu.CompilerParams(
            dimension_semantics=("parallel",)),              # shard tiles across TCs
        cost_estimate=pl.CostEstimate(
            flops=2 * tokens * vpad * D, transcendentals=0,
            bytes_accessed=bytes_accessed),
    )(idx, tab)
    return out.reshape(B, L, D)


def embedding_fill_row0(table, batch, length, *, tile=512, out_dtype=None):
    """drop_text fast path: (B, L, D) filled with the filler-token (row 0) embedding."""
    V, D = table.shape
    out_dtype = table.dtype if out_dtype is None else jnp.dtype(out_dtype)
    tokens = batch * length
    tile = max(8, min(tile, _round_up(tokens, 8)))
    n_tiles = pl.cdiv(tokens, tile)
    row0 = table[:1]                                          # (1, D)

    out = pl.pallas_call(
        _fill_row0_kernel,
        grid=(n_tiles,),
        in_specs=[pl.BlockSpec((1, D), lambda i: (0, 0))],
        out_specs=pl.BlockSpec((tile, D), lambda i: (i, 0)),
        out_shape=jax.ShapeDtypeStruct((tokens, D), out_dtype),
        compiler_params=pltpu.CompilerParams(
            dimension_semantics=("parallel",)),
        cost_estimate=pl.CostEstimate(
            flops=0, transcendentals=0,
            bytes_accessed=D * table.dtype.itemsize + tokens * D * out_dtype.itemsize),
    )(row0)
    return out.reshape(batch, length, D)


# ----------------------------------------------------------------------------
# TextEmbedding.forward (conv_layers == 0 path)
# ----------------------------------------------------------------------------

def text_embedding_forward(params, text, seq_len, drop_text=False, *,
                           tile=512, out_dtype=None):
    """Exact TextEmbedding.forward semantics for conv_layers == 0.

    Mirrors the PyTorch module, including F.pad's behaviour with a negative pad
    amount (right truncation) when text_len > seq_len.
    """
    table = params["text_embed"]                 # (text_num_embeds + 1, text_dim)
    batch, text_len = text.shape

    if drop_text:
        # torch.zeros_like(text) -> every position looks up the filler row (id 0).
        return embedding_fill_row0(table, batch, seq_len, tile=tile, out_dtype=out_dtype)

    t = text + 1                                 # shift: 0 is the filler token
    t = t[:, :seq_len]
    pad_amt = seq_len - text_len                 # F.pad(text, (0, seq_len - text_len))
    if pad_amt >= 0:
        t = jnp.pad(t, ((0, 0), (0, pad_amt)), constant_values=0)
    else:
        t = t[:, : t.shape[1] + pad_amt]         # negative pad == right-truncate
    # TODO(synk): conv_layers > 0 (extra_modeling) path not implemented —
    # precompute_freqs_cis / get_pos_embed_indices / ConvNeXtV2Block are not
    # defined in the provided module source.
    return embedding_gather(table, t, tile=tile, out_dtype=out_dtype)


def init_params(key, text_num_embeds, text_dim):
    return {
        "text_embed": 0.02 * jax.random.normal(
            key, (text_num_embeds + 1, text_dim), jnp.float32),
    }


# ----------------------------------------------------------------------------
# Main
# ----------------------------------------------------------------------------

if __name__ == "__main__":
    text_num_embeds, text_dim = 20, 128          # text_dim multiple of 128 -> lane-dense
    B, nt, seq_len = 2, 8, 16

    key = jax.random.PRNGKey(0)
    kp, kt = jax.random.split(key)
    params = init_params(kp, text_num_embeds, text_dim)
    text = jax.random.randint(kt, (B, nt), 0, text_num_embeds, dtype=jnp.int32)

    def ref_forward(table, text, seq_len):
        t = jnp.pad(text + 1, ((0, 0), (0, seq_len - text.shape[1])), constant_values=0)
        return jnp.take(table, t, axis=0)

    # --- basic single-tile case -------------------------------------------------
    fwd = jax.jit(functools.partial(text_embedding_forward,
                                    seq_len=seq_len, drop_text=False))
    out = jax.block_until_ready(fwd(params, text))
    ref = ref_forward(params["text_embed"], text, seq_len)
    assert out.shape == (B, seq_len, text_dim), out.shape
    assert bool(jnp.all(jnp.isfinite(out)))
    assert bool(jnp.allclose(out, ref, rtol=1e-6, atol=1e-7)), \
        float(jnp.max(jnp.abs(out - ref)))

    # --- multi-tile + ragged tail (tokens not a multiple of the tile) ------------
    seq_len2, tile2 = 40, 32                     # 2*40 = 80 tokens -> tiles 32,32,16
    fwd2 = jax.jit(functools.partial(text_embedding_forward,
                                     seq_len=seq_len2, drop_text=False, tile=tile2))
    out2 = jax.block_until_ready(fwd2(params, text))
    ref2 = ref_forward(params["text_embed"], text, seq_len2)
    assert out2.shape == (B, seq_len2, text_dim)
    assert bool(jnp.allclose(out2, ref2, rtol=1e-6, atol=1e-7)), \
        float(jnp.max(jnp.abs(out2 - ref2)))

    # --- drop_text path: every position equals the filler (row 0) embedding ------
    fwd_drop = jax.jit(functools.partial(text_embedding_forward,
                                         seq_len=seq_len, drop_text=True))
    out_drop = jax.block_until_ready(fwd_drop(params, text))
    drop_ref = jnp.broadcast_to(params["text_embed"][0], (B, seq_len, text_dim))
    assert bool(jnp.array_equal(out_drop, drop_ref))

    print("KERNEL_OK")
</pallas_src>

<mosaic_0001>
module attributes {stable_mosaic.version = 11 : i64} {
  func.func @_embed_onehot_kernel(%arg0: i32, %arg1: memref<32x1xi32, #tpu.memory_space<vmem>>, %arg2: memref<128x128xf32, #tpu.memory_space<vmem>>, %arg3: memref<32x128xf32, #tpu.memory_space<vmem>>) attributes {dimension_semantics = [#tpu.dimension_semantics<parallel>], iteration_bounds = array<i64: 1>, scalar_prefetch = 0 : i64, scratch_operands = 0 : i64, tpu.core_type = #tpu.core_type<tc>, window_params = [{transform_indices = @transform_0, window_bounds = array<i64: 32, 1>}, {pipeline_mode = #tpu.pipeline_mode<synchronous>, transform_indices = @transform_1, window_bounds = array<i64: 128, 128>}, {transform_indices = @transform_2, window_bounds = array<i64: 32, 128>}]} {
    %c0 = arith.constant 0 : index
    %c0_0 = arith.constant 0 : index
    %0 = vector.load %arg1[%c0, %c0_0] : memref<32x1xi32, #tpu.memory_space<vmem>>, vector<32x1xi32>
    %1 = tpu.iota {dimensions = array<i32: 1>} : vector<32x128xi32>
    %2 = vector.broadcast %0 : vector<32x1xi32> to vector<32x128xi32>
    %3 = arith.cmpi eq, %2, %1 : vector<32x128xi32>
    %4 = arith.extui %3 : vector<32x128xi1> to vector<32x128xi32>
    %5 = arith.sitofp %4 : vector<32x128xi32> to vector<32x128xf32>
    %c0_1 = arith.constant 0 : index
    %c0_2 = arith.constant 0 : index
    %6 = vector.load %arg2[%c0_1, %c0_2] : memref<128x128xf32, #tpu.memory_space<vmem>>, vector<128x128xf32>
    %cst = arith.constant dense<0.000000e+00> : vector<32x128xf32>
    %7 = tpu.matmul %5, %6, %cst {dimension_numbers = #tpu.dot_dimension_numbers<[1], [0], [0], [1], [0, 0, 1, 1], [], []>, precision = #tpu.contract_precision<fp32>} : vector<32x128xf32>, vector<128x128xf32>, vector<32x128xf32> -> vector<32x128xf32>
    %c0_3 = arith.constant 0 : index
    %c0_4 = arith.constant 0 : index
    %8 = vector.load %arg3[%c0_3, %c0_4] : memref<32x128xf32, #tpu.memory_space<vmem>>, vector<32x128xf32>
    tpu.vector_store %arg3[%c0_3, %c0_4], %7 {strides = array<i32>} : memref<32x128xf32, #tpu.memory_space<vmem>>, vector<32x128xf32>,
    return
  }
  func.func @transform_0(%arg0: i32) -> (i32, i32) {
    %c0_i32 = arith.constant 0 : i32
    %c0_i32_0 = arith.constant 0 : i32
    return %arg0, %c0_i32 : i32, i32
  }
  func.func @transform_1(%arg0: i32) -> (i32, i32) {
    %c0_i32 = arith.constant 0 : i32
    %c0_i32_0 = arith.constant 0 : i32
    %c0_i32_1 = arith.constant 0 : i32
    return %c0_i32, %c0_i32_0 : i32, i32
  }
  func.func @transform_2(%arg0: i32) -> (i32, i32) {
    %c0_i32 = arith.constant 0 : i32
    %c0_i32_0 = arith.constant 0 : i32
    return %arg0, %c0_i32 : i32, i32
  }
}

</mosaic_0001>

<llo_original>
// kernel: text_embedding_forward.1
$region0: #{text_embedding_forward.1}
  #allocation0 [shape = 'u32[]', space=smem, size = 0x4, offset = 0x4, fixed_abs, tag = 'smem constant byte address 0x4 - core index']
  #allocation1 [shape = 'u32[144,128]{1,0:T(1,128)}', space=vmem, size = 0x12000, scoped, tag = 'internal scratch']
  %s0 = inlined_call_operand.vmem [shape: s32[32,1], index: 0, kind: input, shape index: {}]
  %s1 = inlined_call_operand.vmem [shape: f32[128,128], index: 1, kind: input, shape index: {}]
  %s2 = inlined_call_operand.hbm [shape: f32[32,128], index: 2, kind: output, shape index: {}]
  %s3 = sld [smem:[#allocation0]]
  $region18: #{text_embedding_forward.1} parent=0
    _
  %s5 = ssub.s32 1, %s3
  %s6 = scalar_select 0, %s5, %s3
  $region1: #{text_embedding_forward.1} parent=0
    #allocation2 [shape = 'u8[16384]{0}', space=vmem, size = 0x4000, scoped, tag = 'output window, operand 0, single buffered']
    #allocation3 [shape = 's32[1]{0}', space=sflag, size = 0x4, scoped, tag = 'scoped memory for text_embedding_forward.1']
    %7 = vsyncpa [#allocation3], 0
    // Predicated region
    $region2: #{text_embedding_forward.1} parent=1 // pred_check
      _
    $region3: #{text_embedding_forward.1} parent=1 // pred_check_branch
      %9 = sbr.rel (0) target = $region5
    $region4: #{text_embedding_forward.1} parent=1 // pred_region
      _
    $region5: #{text_embedding_forward.1} parent=1 // pred_fallthru
      _
    // Predicated region
    $region6: #{text_embedding_forward.1} parent=1 // pred_check
      _
    $region7: #{text_embedding_forward.1} parent=1 // pred_check_branch
      %11 = sbr.rel (0) target = $region9
    $region8: #{text_embedding_forward.1} parent=1 // pred_region
      _
    $region9: #{text_embedding_forward.1} parent=1 // pred_fallthru
      _
    %v12 = vld [vmem:[%s0] sm:$0xff]
    %v13 = vld [vmem:[%s0 + $0x8] sm:$0xff]
    %v14 = vld [vmem:[%s0 + $0x10] sm:$0xff]
    %v15 = vld [vmem:[%s0 + $0x18] sm:$0xff]
    %v16 = vlaneseq
    %v17 = vand.u32 %v16, 127
    %18 = vset.pattern.permute.xlu0 0
    %19 = vperm.xlu0 %18, %v12
    %v20 = vpop.permute.xlu0 %19
    %21 = vset.pattern.permute.xlu0 0
    %22 = vperm.xlu0 %21, %v13
    %v23 = vpop.permute.xlu0 %22
    %24 = vset.pattern.permute.xlu0 0
    %25 = vperm.xlu0 %24, %v14
    %v26 = vpop.permute.xlu0 %25
    %27 = vset.pattern.permute.xlu0 0
    %28 = vperm.xlu0 %27, %v15
    %v29 = vpop.permute.xlu0 %28
    %vm30 = vcmp.eq.s32.totalorder %v20, %v17
    %vm31 = vcmp.eq.s32.totalorder %v23, %v17
    %vm32 = vcmp.eq.s32.totalorder %v26, %v17
    %vm33 = vcmp.eq.s32.totalorder %v29, %v17
    %v34 = vsel %vm30, 1, 0
    %v35 = vsel %vm31, 1, 0
    %v36 = vsel %vm32, 1, 0
    %v37 = vsel %vm33, 1, 0
    %v38 = vcvt.s32.f32 %v34
    %v39 = vcvt.s32.f32 %v35
    %v40 = vcvt.s32.f32 %v36
    %v41 = vcvt.s32.f32 %v37
    %v42 = vld [vmem:[%s1] sm:$0xff]
    %v43 = vld [vmem:[%s1 + $0x8] sm:$0xff]
    %v44 = vld [vmem:[%s1 + $0x10] sm:$0xff]
    %v45 = vld [vmem:[%s1 + $0x18] sm:$0xff]
    %v46 = vld [vmem:[%s1 + $0x20] sm:$0xff]
    %v47 = vld [vmem:[%s1 + $0x28] sm:$0xff]
    %v48 = vld [vmem:[%s1 + $0x30] sm:$0xff]
    %v49 = vld [vmem:[%s1 + $0x38] sm:$0xff]
    %v50 = vld [vmem:[%s1 + $0x40] sm:$0xff]
    %v51 = vld [vmem:[%s1 + $0x48] sm:$0xff]
    %v52 = vld [vmem:[%s1 + $0x50] sm:$0xff]
    %v53 = vld [vmem:[%s1 + $0x58] sm:$0xff]
    %v54 = vld [vmem:[%s1 + $0x60] sm:$0xff]
    %v55 = vld [vmem:[%s1 + $0x68] sm:$0xff]
    %v56 = vld [vmem:[%s1 + $0x70] sm:$0xff]
    %v57 = vld [vmem:[%s1 + $0x78] sm:$0xff]
    %58 = vmatprep.subr.mxu0 0.0
    %v59 = vand.u32 %v57, 4294901760
    %60 = vmatpush1.msra.mxu0 %v59
    %61 = vmatprep.subr.mxu0 0.0
    %v62 = vand.u32 %v56, 4294901760
    %63 = vmatpush1.msra.mxu0 %v62
    %64 = vmatprep.subr.mxu0 0.0
    %v65 = vand.u32 %v55, 4294901760
    %66 = vmatpush1.msra.mxu0 %v65
    %67 = vmatprep.subr.mxu0 0.0
    %v68 = vand.u32 %v54, 4294901760
    %69 = vmatpush1.msra.mxu0 %v68
    %70 = vmatprep.subr.mxu0 0.0
    %v71 = vand.u32 %v53, 4294901760
    %72 = vmatpush1.msra.mxu0 %v71
    %73 = vmatprep.subr.mxu0 0.0
    %v74 = vand.u32 %v52, 4294901760
    %75 = vmatpush1.msra.mxu0 %v74
    %76 = vmatprep.subr.mxu0 0.0
    %v77 = vand.u32 %v51, 4294901760
    %78 = vmatpush1.msra.mxu0 %v77
    %79 = vmatprep.subr.mxu0 0.0
    %v80 = vand.u32 %v50, 4294901760
    %81 = vmatpush1.msra.mxu0 %v80
    %82 = vmatprep.subr.mxu0 0.0
    %v83 = vand.u32 %v49, 4294901760
    %84 = vmatpush1.msra.mxu0 %v83
    %85 = vmatprep.subr.mxu0 0.0
    %v86 = vand.u32 %v48, 4294901760
    %87 = vmatpush1.msra.mxu0 %v86
    %88 = vmatprep.subr.mxu0 0.0
    %v89 = vand.u32 %v47, 4294901760
    %90 = vmatpush1.msra.mxu0 %v89
    %91 = vmatprep.subr.mxu0 0.0
    %v92 = vand.u32 %v46, 4294901760
    %93 = vmatpush1.msra.mxu0 %v92
    %94 = vmatprep.subr.mxu0 0.0
    %v95 = vand.u32 %v45, 4294901760
    %96 = vmatpush1.msra.mxu0 %v95
    %97 = vmatprep.subr.mxu0 0.0
    %v98 = vand.u32 %v44, 4294901760
    %99 = vmatpush1.msra.mxu0 %v98
    %100 = vmatprep.subr.mxu0 0.0
    %v101 = vand.u32 %v43, 4294901760
    %102 = vmatpush1.msra.mxu0 %v101
    %103 = vmatprep.subr.mxu0 0.0
    %v104 = vand.u32 %v42, 4294901760
    %105 = vmatpush1.msra.mxu0 %v104
    %106 = vmatprep.subr.mxu0 0.0
    %107 = vmatpush2.msra.mxu0 0.0
    %108 = vmatprep.subr.mxu0 0.0
    %109 = vmatpush2.msra.mxu0 0.0
    %110 = vmatprep.subr.mxu0 0.0
    %111 = vmatpush2.msra.mxu0 0.0
    %112 = vmatprep.subr.mxu0 0.0
    %113 = vmatpush2.msra.mxu0 0.0
    %114 = vmatprep.subr.mxu0 0.0
    %115 = vmatpush2.msra.mxu0 0.0
    %116 = vmatprep.subr.mxu0 0.0
    %117 = vmatpush2.msra.mxu0 0.0
    %118 = vmatprep.subr.mxu0 0.0
    %119 = vmatpush2.msra.mxu0 0.0
    %120 = vmatprep.subr.mxu0 0.0
    %121 = vmatpush2.msra.mxu0 0.0
    %122 = vmatprep.subr.mxu0 0.0
    %123 = vmatpush2.msra.mxu0 0.0
    %124 = vmatprep.subr.mxu0 0.0
    %125 = vmatpush2.msra.mxu0 0.0
    %126 = vmatprep.subr.mxu0 0.0
    %127 = vmatpush2.msra.mxu0 0.0
    %128 = vmatprep.subr.mxu0 0.0
    %129 = vmatpush2.msra.mxu0 0.0
    %130 = vmatprep.subr.mxu0 0.0
    %131 = vmatpush2.msra.mxu0 0.0
    %132 = vmatprep.subr.mxu0 0.0
    %133 = vmatpush2.msra.mxu0 0.0
    %134 = vmatprep.subr.mxu0 0.0
    %135 = vmatpush2.msra.mxu0 0.0
    %136 = vmatprep.subr.mxu0 0.0
    %137 = vmatpush2.msra.mxu0 0.0
    %138 = vmatprep.mubr.f32.mxu0 0.0
    %v139 = vand.u32 %v38, 4294901760
    %v140 = vsub.f32 %v38, %v139
    %v141 = vand.u32 %v140, 4294901760
    %v142 = vsub.f32 %v140, %v141
    %v143 = vand.u32 %v142, 4294901760
    %144 = vmatmul.mubr.f32.gmra.mxu0 %v143
    %v145 = vpop.f32.mrf.mxu0
    %v146 = vadd.f32 0.0, %v145
    %v147 = vpop.f32.mrf.mxu0
    %148 = vmatprep.mubr.f32.mxu0 0.0
    %v149 = vand.u32 %v39, 4294901760
    %v150 = vsub.f32 %v39, %v149
    %v151 = vand.u32 %v150, 4294901760
    %v152 = vsub.f32 %v150, %v151
    %v153 = vand.u32 %v152, 4294901760
    %154 = vmatmul.mubr.f32.gmra.mxu0 %v153
    %v155 = vpop.f32.mrf.mxu0
    %v156 = vadd.f32 0.0, %v155
    %v157 = vpop.f32.mrf.mxu0
    %158 = vmatprep.mubr.f32.mxu0 0.0
    %v159 = vand.u32 %v40, 4294901760
    %v160 = vsub.f32 %v40, %v159
    %v161 = vand.u32 %v160, 4294901760
    %v162 = vsub.f32 %v160, %v161
    %v163 = vand.u32 %v162, 4294901760
    %164 = vmatmul.mubr.f32.gmra.mxu0 %v163
    %v165 = vpop.f32.mrf.mxu0
    %v166 = vadd.f32 0.0, %v165
    %v167 = vpop.f32.mrf.mxu0
    %168 = vmatprep.mubr.f32.mxu0 0.0
    %v169 = vand.u32 %v41, 4294901760
    %v170 = vsub.f32 %v41, %v169
    %v171 = vand.u32 %v170, 4294901760
    %v172 = vsub.f32 %v170, %v171
    %v173 = vand.u32 %v172, 4294901760
    %174 = vmatmul.mubr.f32.gmra.mxu0 %v173
    %v175 = vpop.f32.mrf.mxu0
    %v176 = vadd.f32 0.0, %v175
    %v177 = vpop.f32.mrf.mxu0
    %178 = vdwg.mxu0
    %179 = vmatprep.subr.mxu0 0.0
    %v180 = vand.u32 %v57, 4294901760
    %v181 = vsub.f32 %v57, %v180
    %v182 = vand.u32 %v181, 4294901760
    %v183 = vsub.f32 %v181, %v182
    %v184 = vand.u32 %v183, 4294901760
    %185 = vmatpush1.msra.mxu0 %v184
    %186 = vmatprep.subr.mxu0 0.0
    %v187 = vand.u32 %v56, 4294901760
    %v188 = vsub.f32 %v56, %v187
    %v189 = vand.u32 %v188, 4294901760
    %v190 = vsub.f32 %v188, %v189
    %v191 = vand.u32 %v190, 4294901760
    %192 = vmatpush1.msra.mxu0 %v191
    %193 = vmatprep.subr.mxu0 0.0
    %v194 = vand.u32 %v55, 4294901760
    %v195 = vsub.f32 %v55, %v194
    %v196 = vand.u32 %v195, 4294901760
    %v197 = vsub.f32 %v195, %v196
    %v198 = vand.u32 %v197, 4294901760
    %199 = vmatpush1.msra.mxu0 %v198
    %200 = vmatprep.subr.mxu0 0.0
    %v201 = vand.u32 %v54, 4294901760
    %v202 = vsub.f32 %v54, %v201
    %v203 = vand.u32 %v202, 4294901760
    %v204 = vsub.f32 %v202, %v203
    %v205 = vand.u32 %v204, 4294901760
    %206 = vmatpush1.msra.mxu0 %v205
    %207 = vmatprep.subr.mxu0 0.0
    %v208 = vand.u32 %v53, 4294901760
    %v209 = vsub.f32 %v53, %v208
    %v210 = vand.u32 %v209, 4294901760
    %v211 = vsub.f32 %v209, %v210
    %v212 = vand.u32 %v211, 4294901760
    %213 = vmatpush1.msra.mxu0 %v212
    %214 = vmatprep.subr.mxu0 0.0
    %v215 = vand.u32 %v52, 4294901760
    %v216 = vsub.f32 %v52, %v215
    %v217 = vand.u32 %v216, 4294901760
    %v218 = vsub.f32 %v216, %v217
    %v219 = vand.u32 %v218, 4294901760
    %220 = vmatpush1.msra.mxu0 %v219
    %221 = vmatprep.subr.mxu0 0.0
    %v222 = vand.u32 %v51, 4294901760
    %v223 = vsub.f32 %v51, %v222
    %v224 = vand.u32 %v223, 4294901760
    %v225 = vsub.f32 %v223, %v224
    %v226 = vand.u32 %v225, 4294901760
    %227 = vmatpush1.msra.mxu0 %v226
    %228 = vmatprep.subr.mxu0 0.0
    %v229 = vand.u32 %v50, 4294901760
    %v230 = vsub.f32 %v50, %v229
    %v231 = vand.u32 %v230, 4294901760
    %v232 = vsub.f32 %v230, %v231
    %v233 = vand.u32 %v232, 4294901760
    %234 = vmatpush1.msra.mxu0 %v233
    %235 = vmatprep.subr.mxu0 0.0
    %v236 = vand.u32 %v49, 4294901760
    %v237 = vsub.f32 %v49, %v236
    %v238 = vand.u32 %v237, 4294901760
    %v239 = vsub.f32 %v237, %v238
    %v240 = vand.u32 %v239, 4294901760
    %241 = vmatpush1.msra.mxu0 %v240
    %242 = vmatprep.subr.mxu0 0.0
    %v243 = vand.u32 %v48, 4294901760
    %v244 = vsub.f32 %v48, %v243
    %v245 = vand.u32 %v244, 4294901760
    %v246 = vsub.f32 %v244, %v245
    %v247 = vand.u32 %v246, 4294901760
    %248 = vmatpush1.msra.mxu0 %v247
    %249 = vmatprep.subr.mxu0 0.0
    %v250 = vand.u32 %v47, 4294901760
    %v251 = vsub.f32 %v47, %v250
    %v252 = vand.u32 %v251, 4294901760
    %v253 = vsub.f32 %v251, %v252
    %v254 = vand.u32 %v253, 4294901760
    %255 = vmatpush1.msra.mxu0 %v254
    %256 = vmatprep.subr.mxu0 0.0
    %v257 = vand.u32 %v46, 4294901760
    %v258 = vsub.f32 %v46, %v257
    %v259 = vand.u32 %v258, 4294901760
    %v260 = vsub.f32 %v258, %v259
    %v261 = vand.u32 %v260, 4294901760
    %262 = vmatpush1.msra.mxu0 %v261
    %263 = vmatprep.subr.mxu0 0.0
    %v264 = vand.u32 %v45, 4294901760
    %v265 = vsub.f32 %v45, %v264
    %v266 = vand.u32 %v265, 4294901760
    %v267 = vsub.f32 %v265, %v266
    %v268 = vand.u32 %v267, 4294901760
    %269 = vmatpush1.msra.mxu0 %v268
    %270 = vmatprep.subr.mxu0 0.0
    %v271 = vand.u32 %v44, 4294901760
    %v272 = vsub.f32 %v44, %v271
    %v273 = vand.u32 %v272, 4294901760
    %v274 = vsub.f32 %v272, %v273
    %v275 = vand.u32 %v274, 4294901760
    %276 = vmatpush1.msra.mxu0 %v275
    %277 = vmatprep.subr.mxu0 0.0
    %v278 = vand.u32 %v43, 4294901760
    %v279 = vsub.f32 %v43, %v278
    %v280 = vand.u32 %v279, 4294901760
    %v281 = vsub.f32 %v279, %v280
    %v282 = vand.u32 %v281, 4294901760
    %283 = vmatpush1.msra.mxu0 %v282
    %284 = vmatprep.subr.mxu0 0.0
    %v285 = vand.u32 %v42, 4294901760
    %v286 = vsub.f32 %v42, %v285
    %v287 = vand.u32 %v286, 4294901760
    %v288 = vsub.f32 %v286, %v287
    %v289 = vand.u32 %v288, 4294901760
    %290 = vmatpush1.msra.mxu0 %v289
    %291 = vmatprep.subr.mxu0 0.0
    %292 = vmatpush2.msra.mxu0 0.0
    %293 = vmatprep.subr.mxu0 0.0
    %294 = vmatpush2.msra.mxu0 0.0
    %295 = vmatprep.subr.mxu0 0.0
    %296 = vmatpush2.msra.mxu0 0.0
    %297 = vmatprep.subr.mxu0 0.0
    %298 = vmatpush2.msra.mxu0 0.0
    %299 = vmatprep.subr.mxu0 0.0
    %300 = vmatpush2.msra.mxu0 0.0
    %301 = vmatprep.subr.mxu0 0.0
    %302 = vmatpush2.msra.mxu0 0.0
    %303 = vmatprep.subr.mxu0 0.0
    %304 = vmatpush2.msra.mxu0 0.0
    %305 = vmatprep.subr.mxu0 0.0
    %306 = vmatpush2.msra.mxu0 0.0
    %307 = vmatprep.subr.mxu0 0.0
    %308 = vmatpush2.msra.mxu0 0.0
    %309 = vmatprep.subr.mxu0 0.0
    %310 = vmatpush2.msra.mxu0 0.0
    %311 = vmatprep.subr.mxu0 0.0
    %312 = vmatpush2.msra.mxu0 0.0
    %313 = vmatprep.subr.mxu0 0.0
    %314 = vmatpush2.msra.mxu0 0.0
    %315 = vmatprep.subr.mxu0 0.0
    %316 = vmatpush2.msra.mxu0 0.0
    %317 = vmatprep.subr.mxu0 0.0
    %318 = vmatpush2.msra.mxu0 0.0
    %319 = vmatprep.subr.mxu0 0.0
    %320 = vmatpush2.msra.mxu0 0.0
    %321 = vmatprep.subr.mxu0 0.0
    %322 = vmatpush2.msra.mxu0 0.0
    %323 = vmatprep.mubr.f32.mxu0 0.0
    %v324 = vand.u32 %v38, 4294901760
    %325 = vmatmul.mubr.f32.gmra.mxu0 %v324
    %v326 = vpop.f32.mrf.mxu0
    %v327 = vadd.f32 %v146, %v326
    %v328 = vpop.f32.mrf.mxu0
    %329 = vmatprep.mubr.f32.mxu0 0.0
    %v330 = vand.u32 %v39, 4294901760
    %331 = vmatmul.mubr.f32.gmra.mxu0 %v330
    %v332 = vpop.f32.mrf.mxu0
    %v333 = vadd.f32 %v156, %v332
    %v334 = vpop.f32.mrf.mxu0
    %335 = vmatprep.mubr.f32.mxu0 0.0
    %v336 = vand.u32 %v40, 4294901760
    %337 = vmatmul.mubr.f32.gmra.mxu0 %v336
    %v338 = vpop.f32.mrf.mxu0
    %v339 = vadd.f32 %v166, %v338
    %v340 = vpop.f32.mrf.mxu0
    %341 = vmatprep.mubr.f32.mxu0 0.0
    %v342 = vand.u32 %v41, 4294901760
    %343 = vmatmul.mubr.f32.gmra.mxu0 %v342
    %v344 = vpop.f32.mrf.mxu0
    %v345 = vadd.f32 %v176, %v344
    %v346 = vpop.f32.mrf.mxu0
    %347 = vdwg.mxu0
    %348 = vmatprep.subr.mxu0 0.0
    %v349 = vand.u32 %v57, 4294901760
    %v350 = vsub.f32 %v57, %v349
    %351 = vmatpush1.msra.mxu0 %v350
    %352 = vmatprep.subr.mxu0 0.0
    %v353 = vand.u32 %v56, 4294901760
    %v354 = vsub.f32 %v56, %v353
    %355 = vmatpush1.msra.mxu0 %v354
    %356 = vmatprep.subr.mxu0 0.0
    %v357 = vand.u32 %v55, 4294901760
    %v358 = vsub.f32 %v55, %v357
    %359 = vmatpush1.msra.mxu0 %v358
    %360 = vmatprep.subr.mxu0 0.0
    %v361 = vand.u32 %v54, 4294901760
    %v362 = vsub.f32 %v54, %v361
    %363 = vmatpush1.msra.mxu0 %v362
    %364 = vmatprep.subr.mxu0 0.0
    %v365 = vand.u32 %v53, 4294901760
    %v366 = vsub.f32 %v53, %v365
    %367 = vmatpush1.msra.mxu0 %v366
    %368 = vmatprep.subr.mxu0 0.0
    %v369 = vand.u32 %v52, 4294901760
    %v370 = vsub.f32 %v52, %v369
    %371 = vmatpush1.msra.mxu0 %v370
    %372 = vmatprep.subr.mxu0 0.0
    %v373 = vand.u32 %v51, 4294901760
    %v374 = vsub.f32 %v51, %v373
    %375 = vmatpush1.msra.mxu0 %v374
    %376 = vmatprep.subr.mxu0 0.0
    %v377 = vand.u32 %v50, 4294901760
    %v378 = vsub.f32 %v50, %v377
    %379 = vmatpush1.msra.mxu0 %v378
    %380 = vmatprep.subr.mxu0 0.0
    %v381 = vand.u32 %v49, 4294901760
    %v382 = vsub.f32 %v49, %v381
    %383 = vmatpush1.msra.mxu0 %v382
    %384 = vmatprep.subr.mxu0 0.0
    %v385 = vand.u32 %v48, 4294901760
    %v386 = vsub.f32 %v48, %v385
    %387 = vmatpush1.msra.mxu0 %v386
    %388 = vmatprep.subr.mxu0 0.0
    %v389 = vand.u32 %v47, 4294901760
    %v390 = vsub.f32 %v47, %v389
    %391 = vmatpush1.msra.mxu0 %v390
    %392 = vmatprep.subr.mxu0 0.0
    %v393 = vand.u32 %v46, 4294901760
    %v394 = vsub.f32 %v46, %v393
    %395 = vmatpush1.msra.mxu0 %v394
    %396 = vmatprep.subr.mxu0 0.0
    %v397 = vand.u32 %v45, 4294901760
    %v398 = vsub.f32 %v45, %v397
    %399 = vmatpush1.msra.mxu0 %v398
    %400 = vmatprep.subr.mxu0 0.0
    %v401 = vand.u32 %v44, 4294901760
    %v402 = vsub.f32 %v44, %v401
    %403 = vmatpush1.msra.mxu0 %v402
    %404 = vmatprep.subr.mxu0 0.0
    %v405 = vand.u32 %v43, 4294901760
    %v406 = vsub.f32 %v43, %v405
    %407 = vmatpush1.msra.mxu0 %v406
    %408 = vmatprep.subr.mxu0 0.0
    %v409 = vand.u32 %v42, 4294901760
    %v410 = vsub.f32 %v42, %v409
    %411 = vmatpush1.msra.mxu0 %v410
    %412 = vmatprep.subr.mxu0 0.0
    %413 = vmatpush2.msra.mxu0 0.0
    %414 = vmatprep.subr.mxu0 0.0
    %415 = vmatpush2.msra.mxu0 0.0
    %416 = vmatprep.subr.mxu0 0.0
    %417 = vmatpush2.msra.mxu0 0.0
    %418 = vmatprep.subr.mxu0 0.0
    %419 = vmatpush2.msra.mxu0 0.0
    %420 = vmatprep.subr.mxu0 0.0
    %421 = vmatpush2.msra.mxu0 0.0
    %422 = vmatprep.subr.mxu0 0.0
    %423 = vmatpush2.msra.mxu0 0.0
    %424 = vmatprep.subr.mxu0 0.0
    %425 = vmatpush2.msra.mxu0 0.0
    %426 = vmatprep.subr.mxu0 0.0
    %427 = vmatpush2.msra.mxu0 0.0
    %428 = vmatprep.subr.mxu0 0.0
    %429 = vmatpush2.msra.mxu0 0.0
    %430 = vmatprep.subr.mxu0 0.0
    %431 = vmatpush2.msra.mxu0 0.0
    %432 = vmatprep.subr.mxu0 0.0
    %433 = vmatpush2.msra.mxu0 0.0
    %434 = vmatprep.subr.mxu0 0.0
    %435 = vmatpush2.msra.mxu0 0.0
    %436 = vmatprep.subr.mxu0 0.0
    %437 = vmatpush2.msra.mxu0 0.0
    %438 = vmatprep.subr.mxu0 0.0
    %439 = vmatpush2.msra.mxu0 0.0
    %440 = vmatprep.subr.mxu0 0.0
    %441 = vmatpush2.msra.mxu0 0.0
    %442 = vmatprep.subr.mxu0 0.0
    %443 = vmatpush2.msra.mxu0 0.0
    %444 = vmatprep.mubr.f32.mxu0 0.0
    %v445 = vand.u32 %v38, 4294901760
    %v446 = vsub.f32 %v38, %v445
    %447 = vmatmul.mubr.f32.gmra.mxu0 %v446
    %v448 = vpop.f32.mrf.mxu0
    %v449 = vadd.f32 %v327, %v448
    %v450 = vpop.f32.mrf.mxu0
    %451 = vmatprep.mubr.f32.mxu0 0.0
    %v452 = vand.u32 %v39, 4294901760
    %v453 = vsub.f32 %v39, %v452
    %454 = vmatmul.mubr.f32.gmra.mxu0 %v453
    %v455 = vpop.f32.mrf.mxu0
    %v456 = vadd.f32 %v333, %v455
    %v457 = vpop.f32.mrf.mxu0
    %458 = vmatprep.mubr.f32.mxu0 0.0
    %v459 = vand.u32 %v40, 4294901760
    %v460 = vsub.f32 %v40, %v459
    %461 = vmatmul.mubr.f32.gmra.mxu0 %v460
    %v462 = vpop.f32.mrf.mxu0
    %v463 = vadd.f32 %v339, %v462
    %v464 = vpop.f32.mrf.mxu0
    %465 = vmatprep.mubr.f32.mxu0 0.0
    %v466 = vand.u32 %v41, 4294901760
    %v467 = vsub.f32 %v41, %v466
    %468 = vmatmul.mubr.f32.gmra.mxu0 %v467
    %v469 = vpop.f32.mrf.mxu0
    %v470 = vadd.f32 %v345, %v469
    %v471 = vpop.f32.mrf.mxu0
    %472 = vdwg.mxu0
    %473 = vmatprep.subr.mxu0 0.0
    %v474 = vand.u32 %v57, 4294901760
    %475 = vmatpush1.msra.mxu0 %v474
    %476 = vmatprep.subr.mxu0 0.0
    %v477 = vand.u32 %v56, 4294901760
    %478 = vmatpush1.msra.mxu0 %v477
    %479 = vmatprep.subr.mxu0 0.0
    %v480 = vand.u32 %v55, 4294901760
    %481 = vmatpush1.msra.mxu0 %v480
    %482 = vmatprep.subr.mxu0 0.0
    %v483 = vand.u32 %v54, 4294901760
    %484 = vmatpush1.msra.mxu0 %v483
    %485 = vmatprep.subr.mxu0 0.0
    %v486 = vand.u32 %v53, 4294901760
    %487 = vmatpush1.msra.mxu0 %v486
    %488 = vmatprep.subr.mxu0 0.0
    %v489 = vand.u32 %v52, 4294901760
    %490 = vmatpush1.msra.mxu0 %v489
    %491 = vmatprep.subr.mxu0 0.0
    %v492 = vand.u32 %v51, 4294901760
    %493 = vmatpush1.msra.mxu0 %v492
    %494 = vmatprep.subr.mxu0 0.0
    %v495 = vand.u32 %v50, 4294901760
    %496 = vmatpush1.msra.mxu0 %v495
    %497 = vmatprep.subr.mxu0 0.0
    %v498 = vand.u32 %v49, 4294901760
    %499 = vmatpush1.msra.mxu0 %v498
    %500 = vmatprep.subr.mxu0 0.0
    %v501 = vand.u32 %v48, 4294901760
    %502 = vmatpush1.msra.mxu0 %v501
    %503 = vmatprep.subr.mxu0 0.0
    %v504 = vand.u32 %v47, 4294901760
    %505 = vmatpush1.msra.mxu0 %v504
    %506 = vmatprep.subr.mxu0 0.0
    %v507 = vand.u32 %v46, 4294901760
    %508 = vmatpush1.msra.mxu0 %v507
    %509 = vmatprep.subr.mxu0 0.0
    %v510 = vand.u32 %v45, 4294901760
    %511 = vmatpush1.msra.mxu0 %v510
    %512 = vmatprep.subr.mxu0 0.0
    %v513 = vand.u32 %v44, 4294901760
    %514 = vmatpush1.msra.mxu0 %v513
    %515 = vmatprep.subr.mxu0 0.0
    %v516 = vand.u32 %v43, 4294901760
    %517 = vmatpush1.msra.mxu0 %v516
    %518 = vmatprep.subr.mxu0 0.0
    %v519 = vand.u32 %v42, 4294901760
    %520 = vmatpush1.msra.mxu0 %v519
    %521 = vmatprep.subr.mxu0 0.0
    %522 = vmatpush2.msra.mxu0 0.0
    %523 = vmatprep.subr.mxu0 0.0
    %524 = vmatpush2.msra.mxu0 0.0
    %525 = vmatprep.subr.mxu0 0.0
    %526 = vmatpush2.msra.mxu0 0.0
    %527 = vmatprep.subr.mxu0 0.0
    %528 = vmatpush2.msra.mxu0 0.0
    %529 = vmatprep.subr.mxu0 0.0
    %530 = vmatpush2.msra.mxu0 0.0
    %531 = vmatprep.subr.mxu0 0.0
    %532 = vmatpush2.msra.mxu0 0.0
    %533 = vmatprep.subr.mxu0 0.0
    %534 = vmatpush2.msra.mxu0 0.0
    %535 = vmatprep.subr.mxu0 0.0
    %536 = vmatpush2.msra.mxu0 0.0
    %537 = vmatprep.subr.mxu0 0.0
    %538 = vmatpush2.msra.mxu0 0.0
    %539 = vmatprep.subr.mxu0 0.0
    %540 = vmatpush2.msra.mxu0 0.0
    %541 = vmatprep.subr.mxu0 0.0
    %542 = vmatpush2.msra.mxu0 0.0
    %543 = vmatprep.subr.mxu0 0.0
    %544 = vmatpush2.msra.mxu0 0.0
    %545 = vmatprep.subr.mxu0 0.0
    %546 = vmatpush2.msra.mxu0 0.0
    %547 = vmatprep.subr.mxu0 0.0
    %548 = vmatpush2.msra.mxu0 0.0
    %549 = vmatprep.subr.mxu0 0.0
    %550 = vmatpush2.msra.mxu0 0.0
    %551 = vmatprep.subr.mxu0 0.0
    %552 = vmatpush2.msra.mxu0 0.0
    %553 = vmatprep.mubr.f32.mxu0 0.0
    %v554 = vand.u32 %v38, 4294901760
    %v555 = vsub.f32 %v38, %v554
    %v556 = vand.u32 %v555, 4294901760
    %557 = vmatmul.mubr.f32.gmra.mxu0 %v556
    %v558 = vpop.f32.mrf.mxu0
    %v559 = vadd.f32 %v449, %v558
    %v560 = vpop.f32.mrf.mxu0
    %561 = vmatprep.mubr.f32.mxu0 0.0
    %v562 = vand.u32 %v39, 4294901760
    %v563 = vsub.f32 %v39, %v562
    %v564 = vand.u32 %v563, 4294901760
    %565 = vmatmul.mubr.f32.gmra.mxu0 %v564
    %v566 = vpop.f32.mrf.mxu0
    %v567 = vadd.f32 %v456, %v566
    %v568 = vpop.f32.mrf.mxu0
    %569 = vmatprep.mubr.f32.mxu0 0.0
    %v570 = vand.u32 %v40, 4294901760
    %v571 = vsub.f32 %v40, %v570
    %v572 = vand.u32 %v571, 4294901760
    %573 = vmatmul.mubr.f32.gmra.mxu0 %v572
    %v574 = vpop.f32.mrf.mxu0
    %v575 = vadd.f32 %v463, %v574
    %v576 = vpop.f32.mrf.mxu0
    %577 = vmatprep.mubr.f32.mxu0 0.0
    %v578 = vand.u32 %v41, 4294901760
    %v579 = vsub.f32 %v41, %v578
    %v580 = vand.u32 %v579, 4294901760
    %581 = vmatmul.mubr.f32.gmra.mxu0 %v580
    %v582 = vpop.f32.mrf.mxu0
    %v583 = vadd.f32 %v470, %v582
    %v584 = vpop.f32.mrf.mxu0
    %585 = vdwg.mxu0
    %586 = vmatprep.subr.mxu0 0.0
    %v587 = vand.u32 %v57, 4294901760
    %v588 = vsub.f32 %v57, %v587
    %v589 = vand.u32 %v588, 4294901760
    %590 = vmatpush1.msra.mxu0 %v589
    %591 = vmatprep.subr.mxu0 0.0
    %v592 = vand.u32 %v56, 4294901760
    %v593 = vsub.f32 %v56, %v592
    %v594 = vand.u32 %v593, 4294901760
    %595 = vmatpush1.msra.mxu0 %v594
    %596 = vmatprep.subr.mxu0 0.0
    %v597 = vand.u32 %v55, 4294901760
    %v598 = vsub.f32 %v55, %v597
    %v599 = vand.u32 %v598, 4294901760
    %600 = vmatpush1.msra.mxu0 %v599
    %601 = vmatprep.subr.mxu0 0.0
    %v602 = vand.u32 %v54, 4294901760
    %v603 = vsub.f32 %v54, %v602
    %v604 = vand.u32 %v603, 4294901760
    %605 = vmatpush1.msra.mxu0 %v604
    %606 = vmatprep.subr.mxu0 0.0
    %v607 = vand.u32 %v53, 4294901760
    %v608 = vsub.f32 %v53, %v607
    %v609 = vand.u32 %v608, 4294901760
    %610 = vmatpush1.msra.mxu0 %v609
    %611 = vmatprep.subr.mxu0 0.0
    %v612 = vand.u32 %v52, 4294901760
    %v613 = vsub.f32 %v52, %v612
    %v614 = vand.u32 %v613, 4294901760
    %615 = vmatpush1.msra.mxu0 %v614
    %616 = vmatprep.subr.mxu0 0.0
    %v617 = vand.u32 %v51, 4294901760
    %v618 = vsub.f32 %v51, %v617
    %v619 = vand.u32 %v618, 4294901760
    %620 = vmatpush1.msra.mxu0 %v619
    %621 = vmatprep.subr.mxu0 0.0
    %v622 = vand.u32 %v50, 4294901760
    %v623 = vsub.f32 %v50, %v622
    %v624 = vand.u32 %v623, 4294901760
    %625 = vmatpush1.msra.mxu0 %v624
    %626 = vmatprep.subr.mxu0 0.0
    %v627 = vand.u32 %v49, 4294901760
    %v628 = vsub.f32 %v49, %v627
    %v629 = vand.u32 %v628, 4294901760
    %630 = vmatpush1.msra.mxu0 %v629
    %631 = vmatprep.subr.mxu0 0.0
    %v632 = vand.u32 %v48, 4294901760
    %v633 = vsub.f32 %v48, %v632
    %v634 = vand.u32 %v633, 4294901760
    %635 = vmatpush1.msra.mxu0 %v634
    %636 = vmatprep.subr.mxu0 0.0
    %v637 = vand.u32 %v47, 4294901760
    %v638 = vsub.f32 %v47, %v637
    %v639 = vand.u32 %v638, 4294901760
    %640 = vmatpush1.msra.mxu0 %v639
    %641 = vmatprep.subr.mxu0 0.0
    %v642 = vand.u32 %v46, 4294901760
    %v643 = vsub.f32 %v46, %v642
    %v644 = vand.u32 %v643, 4294901760
    %645 = vmatpush1.msra.mxu0 %v644
    %646 = vmatprep.subr.mxu0 0.0
    %v647 = vand.u32 %v45, 4294901760
    %v648 = vsub.f32 %v45, %v647
    %v649 = vand.u32 %v648, 4294901760
    %650 = vmatpush1.msra.mxu0 %v649
    %651 = vmatprep.subr.mxu0 0.0
    %v652 = vand.u32 %v44, 4294901760
    %v653 = vsub.f32 %v44, %v652
    %v654 = vand.u32 %v653, 4294901760
    %655 = vmatpush1.msra.mxu0 %v654
    %656 = vmatprep.subr.mxu0 0.0
    %v657 = vand.u32 %v43, 4294901760
    %v658 = vsub.f32 %v43, %v657
    %v659 = vand.u32 %v658, 4294901760
    %660 = vmatpush1.msra.mxu0 %v659
    %661 = vmatprep.subr.mxu0 0.0
    %v662 = vand.u32 %v42, 4294901760
    %v663 = vsub.f32 %v42, %v662
    %v664 = vand.u32 %v663, 4294901760
    %665 = vmatpush1.msra.mxu0 %v664
    %666 = vmatprep.subr.mxu0 0.0
    %667 = vmatpush2.msra.mxu0 0.0
    %668 = vmatprep.subr.mxu0 0.0
    %669 = vmatpush2.msra.mxu0 0.0
    %670 = vmatprep.subr.mxu0 0.0
    %671 = vmatpush2.msra.mxu0 0.0
    %672 = vmatprep.subr.mxu0 0.0
    %673 = vmatpush2.msra.mxu0 0.0
    %674 = vmatprep.subr.mxu0 0.0
    %675 = vmatpush2.msra.mxu0 0.0
    %676 = vmatprep.subr.mxu0 0.0
    %677 = vmatpush2.msra.mxu0 0.0
    %678 = vmatprep.subr.mxu0 0.0
    %679 = vmatpush2.msra.mxu0 0.0
    %680 = vmatprep.subr.mxu0 0.0
    %681 = vmatpush2.msra.mxu0 0.0
    %682 = vmatprep.subr.mxu0 0.0
    %683 = vmatpush2.msra.mxu0 0.0
    %684 = vmatprep.subr.mxu0 0.0
    %685 = vmatpush2.msra.mxu0 0.0
    %686 = vmatprep.subr.mxu0 0.0
    %687 = vmatpush2.msra.mxu0 0.0
    %688 = vmatprep.subr.mxu0 0.0
    %689 = vmatpush2.msra.mxu0 0.0
    %690 = vmatprep.subr.mxu0 0.0
    %691 = vmatpush2.msra.mxu0 0.0
    %692 = vmatprep.subr.mxu0 0.0
    %693 = vmatpush2.msra.mxu0 0.0
    %694 = vmatprep.subr.mxu0 0.0
    %695 = vmatpush2.msra.mxu0 0.0
    %696 = vmatprep.subr.mxu0 0.0
    %697 = vmatpush2.msra.mxu0 0.0
    %698 = vmatprep.mubr.f32.mxu0 0.0
    %v699 = vand.u32 %v38, 4294901760
    %700 = vmatmul.mubr.f32.gmra.mxu0 %v699
    %v701 = vpop.f32.mrf.mxu0
    %v702 = vadd.f32 %v559, %v701
    %v703 = vpop.f32.mrf.mxu0
    %704 = vmatprep.mubr.f32.mxu0 0.0
    %v705 = vand.u32 %v39, 4294901760
    %706 = vmatmul.mubr.f32.gmra.mxu0 %v705
    %v707 = vpop.f32.mrf.mxu0
    %v708 = vadd.f32 %v567, %v707
    %v709 = vpop.f32.mrf.mxu0
    %710 = vmatprep.mubr.f32.mxu0 0.0
    %v711 = vand.u32 %v40, 4294901760
    %712 = vmatmul.mubr.f32.gmra.mxu0 %v711
    %v713 = vpop.f32.mrf.mxu0
    %v714 = vadd.f32 %v575, %v713
    %v715 = vpop.f32.mrf.mxu0
    %716 = vmatprep.mubr.f32.mxu0 0.0
    %v717 = vand.u32 %v41, 4294901760
    %718 = vmatmul.mubr.f32.gmra.mxu0 %v717
    %v719 = vpop.f32.mrf.mxu0
    %v720 = vadd.f32 %v583, %v719
    %v721 = vpop.f32.mrf.mxu0
    %722 = vdwg.mxu0
    %723 = vmatprep.subr.mxu0 0.0
    %v724 = vand.u32 %v57, 4294901760
    %725 = vmatpush1.msra.mxu0 %v724
    %726 = vmatprep.subr.mxu0 0.0
    %v727 = vand.u32 %v56, 4294901760
    %728 = vmatpush1.msra.mxu0 %v727
    %729 = vmatprep.subr.mxu0 0.0
    %v730 = vand.u32 %v55, 4294901760
    %731 = vmatpush1.msra.mxu0 %v730
    %732 = vmatprep.subr.mxu0 0.0
    %v733 = vand.u32 %v54, 4294901760
    %734 = vmatpush1.msra.mxu0 %v733
    %735 = vmatprep.subr.mxu0 0.0
    %v736 = vand.u32 %v53, 4294901760
    %737 = vmatpush1.msra.mxu0 %v736
    %738 = vmatprep.subr.mxu0 0.0
    %v739 = vand.u32 %v52, 4294901760
    %740 = vmatpush1.msra.mxu0 %v739
    %741 = vmatprep.subr.mxu0 0.0
    %v742 = vand.u32 %v51, 4294901760
    %743 = vmatpush1.msra.mxu0 %v742
    %744 = vmatprep.subr.mxu0 0.0
    %v745 = vand.u32 %v50, 4294901760
    %746 = vmatpush1.msra.mxu0 %v745
    %747 = vmatprep.subr.mxu0 0.0
    %v748 = vand.u32 %v49, 4294901760
    %749 = vmatpush1.msra.mxu0 %v748
    %750 = vmatprep.subr.mxu0 0.0
    %v751 = vand.u32 %v48, 4294901760
    %752 = vmatpush1.msra.mxu0 %v751
    %753 = vmatprep.subr.mxu0 0.0
    %v754 = vand.u32 %v47, 4294901760
    %755 = vmatpush1.msra.mxu0 %v754
    %756 = vmatprep.subr.mxu0 0.0
    %v757 = vand.u32 %v46, 4294901760
    %758 = vmatpush1.msra.mxu0 %v757
    %759 = vmatprep.subr.mxu0 0.0
    %v760 = vand.u32 %v45, 4294901760
    %761 = vmatpush1.msra.mxu0 %v760
    %762 = vmatprep.subr.mxu0 0.0
    %v763 = vand.u32 %v44, 4294901760
    %764 = vmatpush1.msra.mxu0 %v763
    %765 = vmatprep.subr.mxu0 0.0
    %v766 = vand.u32 %v43, 4294901760
    %767 = vmatpush1.msra.mxu0 %v766
    %768 = vmatprep.subr.mxu0 0.0
    %v769 = vand.u32 %v42, 4294901760
    %770 = vmatpush1.msra.mxu0 %v769
    %771 = vmatprep.subr.mxu0 0.0
    %772 = vmatpush2.msra.mxu0 0.0
    %773 = vmatprep.subr.mxu0 0.0
    %774 = vmatpush2.msra.mxu0 0.0
    %775 = vmatprep.subr.mxu0 0.0
    %776 = vmatpush2.msra.mxu0 0.0
    %777 = vmatprep.subr.mxu0 0.0
    %778 = vmatpush2.msra.mxu0 0.0
    %779 = vmatprep.subr.mxu0 0.0
    %780 = vmatpush2.msra.mxu0 0.0
    %781 = vmatprep.subr.mxu0 0.0
    %782 = vmatpush2.msra.mxu0 0.0
    %783 = vmatprep.subr.mxu0 0.0
    %784 = vmatpush2.msra.mxu0 0.0
    %785 = vmatprep.subr.mxu0 0.0
    %786 = vmatpush2.msra.mxu0 0.0
    %787 = vmatprep.subr.mxu0 0.0
    %788 = vmatpush2.msra.mxu0 0.0
    %789 = vmatprep.subr.mxu0 0.0
    %790 = vmatpush2.msra.mxu0 0.0
    %791 = vmatprep.subr.mxu0 0.0
    %792 = vmatpush2.msra.mxu0 0.0
    %793 = vmatprep.subr.mxu0 0.0
    %794 = vmatpush2.msra.mxu0 0.0
    %795 = vmatprep.subr.mxu0 0.0
    %796 = vmatpush2.msra.mxu0 0.0
    %797 = vmatprep.subr.mxu0 0.0
    %798 = vmatpush2.msra.mxu0 0.0
    %799 = vmatprep.subr.mxu0 0.0
    %800 = vmatpush2.msra.mxu0 0.0
    %801 = vmatprep.subr.mxu0 0.0
    %802 = vmatpush2.msra.mxu0 0.0
    %803 = vmatprep.mubr.f32.mxu0 0.0
    %v804 = vand.u32 %v38, 4294901760
    %805 = vmatmul.mubr.f32.gmra.mxu0 %v804
    %v806 = vpop.f32.mrf.mxu0
    %v807 = vadd.f32 %v702, %v806
    %v808 = vpop.f32.mrf.mxu0
    %809 = vmatprep.mubr.f32.mxu0 0.0
    %v810 = vand.u32 %v39, 4294901760
    %811 = vmatmul.mubr.f32.gmra.mxu0 %v810
    %v812 = vpop.f32.mrf.mxu0
    %v813 = vadd.f32 %v708, %v812
    %v814 = vpop.f32.mrf.mxu0
    %815 = vmatprep.mubr.f32.mxu0 0.0
    %v816 = vand.u32 %v40, 4294901760
    %817 = vmatmul.mubr.f32.gmra.mxu0 %v816
    %v818 = vpop.f32.mrf.mxu0
    %v819 = vadd.f32 %v714, %v818
    %v820 = vpop.f32.mrf.mxu0
    %821 = vmatprep.mubr.f32.mxu0 0.0
    %v822 = vand.u32 %v41, 4294901760
    %823 = vmatmul.mubr.f32.gmra.mxu0 %v822
    %v824 = vpop.f32.mrf.mxu0
    %v825 = vadd.f32 %v720, %v824
    %v826 = vpop.f32.mrf.mxu0
    %827 = vdwg.mxu0
    %828 = vst [vmem:[#allocation2] sm:$0xff] %v807
    %829 = vst [vmem:[#allocation2 + $0x8] sm:$0xff] %v813
    %830 = vst [vmem:[#allocation2 + $0x10] sm:$0xff] %v819
    %831 = vst [vmem:[#allocation2 + $0x18] sm:$0xff] %v825
    // Predicated region
    $region10: #{text_embedding_forward.1} parent=1 // pred_check
      _
    $region11: #{text_embedding_forward.1} parent=1 // pred_check_branch
      %833 = sbr.rel (0) target = $region13
    $region12: #{text_embedding_forward.1} parent=1 // pred_region
      %s835 = ssub.s32 512, 512
      %836 = vsyncadd [#allocation3], %s835
      %s837 = sshll.u32 [#allocation2], 4
      %s838 = int_to_ptr.vmem [resolvable:$true] %s837
      %843 = dma.vmem_to_hbm [thread:$0]  %s838, 512, %s2, [#allocation3], 128, 128, 8
    $region13: #{text_embedding_forward.1} parent=1 // pred_fallthru
      _
    // Predicated region
    $region14: #{text_embedding_forward.1} parent=1 // pred_check
      _
    $region15: #{text_embedding_forward.1} parent=1 // pred_check_branch
      %845 = sbr.rel (0) target = $region17
    $region16: #{text_embedding_forward.1} parent=1 // pred_region
      %846 = dma.done [#allocation3], 512
    $region17: #{text_embedding_forward.1} parent=1 // pred_fallthru
      _
    %847 = vsyncpa [#allocation3], 1

</llo_original>
